<compile_context>
chip_gen: v6e
topology: v6e:2x2x1
jax: 0.10.0
libtpu: 0.0.40
codegen_flags: <defaults>
</compile_context>

<pallas_src>
import functools
import math

import jax
import jax.numpy as jnp
from jax.experimental import pallas as pl
from jax.experimental.pallas import tpu as pltpu

LANES = 128
PAD_LOGIT = -1.0e9   # sigmoid(PAD_LOGIT) == 0 and log1p(exp(PAD_LOGIT)) == 0 in f32


def _round_up(x, m):
    return ((x + m - 1) // m) * m


def _tpu_kind():
    """Best-effort device-kind string (e.g. 'tpu v6e'); empty on failure."""
    try:
        return jax.devices()[0].device_kind.lower()
    except Exception:  # pragma: no cover - defensive
        return ""


def _dice_bce_kernel(pred_ref, true_ref, out_ref,
                     bce_acc, inter_acc, union_acc, *,
                     sub_tiles, approx_sigmoid):
    k = pl.program_id(1)                 # tile index within this split
    last_k = pl.num_programs(1) - 1

    # zero the small (8, 128) accumulators at the start of each split's stream
    @pl.when(k == 0)
    def _():
        bce_acc[...] = jnp.zeros_like(bce_acc)
        inter_acc[...] = jnp.zeros_like(inter_acc)
        union_acc[...] = jnp.zeros_like(union_acc)

    x = pred_ref[...].astype(jnp.float32)   # logits
    y = true_ref[...].astype(jnp.float32)   # targets

    # reuse e = exp(-|x|) for both the numerically stable BCE term and sigmoid:
    #   bce        = max(x, 0) - x*y + log1p(exp(-|x|))
    #   sigmoid(x) = 1/(1+e) if x >= 0 else e/(1+e)
    e = jnp.exp(-jnp.abs(x))
    bce = jnp.maximum(x, 0.0) - x * y + jnp.log1p(e)
    num = jnp.where(x >= 0.0, 1.0, e)
    if approx_sigmoid:
        p = num * pl.reciprocal(1.0 + e, approx=True)   # EUP-only, ~2^-12 rel err
    else:
        p = num / (1.0 + e)

    def vreg_sum(t):
        # (tile_rows, 128) -> (8, 128) via whole-(8,128)-vreg adds: pure VALU,
        # no XLU, no relayout, and no full-tile accumulator read-modify-write.
        return t.reshape(sub_tiles, 8, LANES).sum(axis=0)

    bce_acc[...] += vreg_sum(bce)
    inter_acc[...] += vreg_sum(p * y)
    union_acc[...] += vreg_sum(p + y)

    # finalize this split: sublane-reduce the accumulators and emit a
    # lane-dense (1, 3, 128) partial-sum block; the tiny cross-lane reduction
    # and the loss weighting happen in the JAX wrapper.
    @pl.when(k == last_k)
    def _():
        out_ref[...] = jnp.concatenate(
            [jnp.sum(bce_acc[...], axis=0, keepdims=True),
             jnp.sum(inter_acc[...], axis=0, keepdims=True),
             jnp.sum(union_acc[...], axis=0, keepdims=True)],
            axis=0)[None]


def dice_bce_loss(y_pred, y_true, *, dice_weight=0.5, bce_weight=0.5,
                  smooth=1e-6, approx_sigmoid=False):
    """Pallas TPU implementation of DiceBCELoss.forward. Returns a scalar f32."""
    assert y_pred.shape == y_true.shape
    n = math.prod(y_pred.shape)

    kind = _tpu_kind()
    is_v7 = "v7" in kind
    max_tile_rows = 4096 if is_v7 else 2048   # f32: 2 MiB / 1 MiB per tile per input
    n_tc = 2 if is_v7 else 1                  # TensorCores per chip

    rows = pl.cdiv(n, LANES)
    tile_rows = min(max_tile_rows, _round_up(rows, 8))
    tiles_data = pl.cdiv(rows, tile_rows)
    num_splits = n_tc if tiles_data >= n_tc else 1
    total_tiles = _round_up(tiles_data, num_splits)
    tiles_per_split = total_tiles // num_splits
    rows_pad = total_tiles * tile_rows
    total_pad = rows_pad * LANES

    def _as_2d(a, pad_value):
        flat = a.reshape(-1)                     # native dtype, no host upcast
        if total_pad != n:                       # pad only when actually needed
            flat = jnp.pad(flat, (0, total_pad - n), constant_values=pad_value)
        return flat.reshape(rows_pad, LANES)

    # pad logits with a huge negative value and targets with 0 so padded
    # elements contribute exactly 0 to BCE, intersection and union.
    pred2d = _as_2d(y_pred, PAD_LOGIT)
    true2d = _as_2d(y_true, 0)

    kernel = functools.partial(
        _dice_bce_kernel,
        sub_tiles=tile_rows // 8,
        approx_sigmoid=approx_sigmoid,
    )

    partials = pl.pallas_call(
        kernel,
        out_shape=jax.ShapeDtypeStruct((num_splits, 3, LANES), jnp.float32),
        grid_spec=pltpu.PrefetchScalarGridSpec(
            num_scalar_prefetch=0,
            grid=(num_splits, tiles_per_split),
            in_specs=[
                pl.BlockSpec((tile_rows, LANES),
                             lambda s, k: (s * tiles_per_split + k, 0)),
                pl.BlockSpec((tile_rows, LANES),
                             lambda s, k: (s * tiles_per_split + k, 0)),
            ],
            out_specs=pl.BlockSpec((1, 3, LANES), lambda s, k: (s, 0, 0)),
            scratch_shapes=[pltpu.VMEM((8, LANES), jnp.float32)] * 3,
        ),
        compiler_params=pltpu.CompilerParams(
            dimension_semantics=("parallel", "arbitrary")),
    )(pred2d, true2d)

    # tiny finalize in plain JAX: combine per-split, per-lane partials
    sums = jnp.sum(partials, axis=(0, 2))        # [bce_sum, intersection, union]
    bce_loss = sums[0] / jnp.float32(n)          # mean reduction
    intersection = sums[1]
    union = sums[2]
    dice_loss = 1.0 - (2.0 * intersection + smooth) / (union + smooth)
    return bce_weight * bce_loss + dice_weight * dice_loss


def _dice_bce_ref(y_pred, y_true, *, dice_weight=0.5, bce_weight=0.5,
                  smooth=1e-6):
    """Pure-JAX reference mirroring the PyTorch DiceBCELoss module."""
    x = y_pred.astype(jnp.float32)
    y = y_true.astype(jnp.float32)
    bce = jnp.mean(jnp.maximum(x, 0.0) - x * y + jnp.log1p(jnp.exp(-jnp.abs(x))))
    p = jax.nn.sigmoid(x).reshape(-1)
    t = y.reshape(-1)
    inter = jnp.sum(p * t)
    union = jnp.sum(p) + jnp.sum(t)
    dice = 1.0 - (2.0 * inter + smooth) / (union + smooth)
    return bce_weight * bce + dice_weight * dice


if __name__ == "__main__":
    key = jax.random.PRNGKey(0)
    k1, k2 = jax.random.split(key)

    # y_pred: raw logits, y_true: binary mask — NCHW (B=2, C=4, H=16, W=16)
    shape = (2, 4, 16, 16)
    y_pred = jax.random.normal(k1, shape, dtype=jnp.float32)
    y_true = (jax.random.uniform(k2, shape) > 0.5).astype(jnp.float32)

    loss = jax.jit(dice_bce_loss)(y_pred, y_true)
    loss = jax.block_until_ready(loss)

    ref = _dice_bce_ref(y_pred, y_true)
    assert jnp.allclose(loss, ref, rtol=1e-5, atol=1e-5), (loss, ref)

    print("KERNEL_OK")
</pallas_src>

<mosaic_0001>
module attributes {stable_mosaic.version = 11 : i64} {
  func.func @_dice_bce_kernel(%arg0: i32, %arg1: i32, %arg2: memref<16x128xf32, #tpu.memory_space<vmem>>, %arg3: memref<16x128xf32, #tpu.memory_space<vmem>>, %arg4: memref<1x3x128xf32, #tpu.memory_space<vmem>>, %arg5: memref<8x128xf32, #tpu.memory_space<vmem>>, %arg6: memref<8x128xf32, #tpu.memory_space<vmem>>, %arg7: memref<8x128xf32, #tpu.memory_space<vmem>>) attributes {dimension_semantics = [#tpu.dimension_semantics<parallel>, #tpu.dimension_semantics<arbitrary>], iteration_bounds = array<i64: 1, 1>, scalar_prefetch = 0 : i64, scratch_operands = 3 : i64, tpu.core_type = #tpu.core_type<tc>, window_params = [{transform_indices = @transform_0, window_bounds = array<i64: 16, 128>}, {transform_indices = @transform_1, window_bounds = array<i64: 16, 128>}, {transform_indices = @transform_2, window_bounds = array<i64: 1, 3, 128>}]} {
    %c0_i32 = arith.constant 0 : i32
    %0 = arith.cmpi eq, %arg1, %c0_i32 : i32
    %1 = arith.extui %0 : i1 to i32
    %c0_i32_0 = arith.constant 0 : i32
    %2 = arith.cmpi ne, %1, %c0_i32_0 : i32
    scf.if %2 {
      %cst_25 = arith.constant 0.000000e+00 : f32
      %42 = vector.broadcast %cst_25 : f32 to vector<8x128xf32>
      %c0_26 = arith.constant 0 : index
      %c0_27 = arith.constant 0 : index
      %43 = vector.load %arg5[%c0_26, %c0_27] : memref<8x128xf32, #tpu.memory_space<vmem>>, vector<8x128xf32>
      tpu.vector_store %arg5[%c0_26, %c0_27], %42 {strides = array<i32>} : memref<8x128xf32, #tpu.memory_space<vmem>>, vector<8x128xf32>,
      %cst_28 = arith.constant 0.000000e+00 : f32
      %44 = vector.broadcast %cst_28 : f32 to vector<8x128xf32>
      %c0_29 = arith.constant 0 : index
      %c0_30 = arith.constant 0 : index
      %45 = vector.load %arg6[%c0_29, %c0_30] : memref<8x128xf32, #tpu.memory_space<vmem>>, vector<8x128xf32>
      tpu.vector_store %arg6[%c0_29, %c0_30], %44 {strides = array<i32>} : memref<8x128xf32, #tpu.memory_space<vmem>>, vector<8x128xf32>,
      %cst_31 = arith.constant 0.000000e+00 : f32
      %46 = vector.broadcast %cst_31 : f32 to vector<8x128xf32>
      %c0_32 = arith.constant 0 : index
      %c0_33 = arith.constant 0 : index
      %47 = vector.load %arg7[%c0_32, %c0_33] : memref<8x128xf32, #tpu.memory_space<vmem>>, vector<8x128xf32>
      tpu.vector_store %arg7[%c0_32, %c0_33], %46 {strides = array<i32>} : memref<8x128xf32, #tpu.memory_space<vmem>>, vector<8x128xf32>,
    } else {
    }
    %c0 = arith.constant 0 : index
    %c0_1 = arith.constant 0 : index
    %3 = vector.load %arg2[%c0, %c0_1] : memref<16x128xf32, #tpu.memory_space<vmem>>, vector<16x128xf32>
    %c0_2 = arith.constant 0 : index
    %c0_3 = arith.constant 0 : index
    %4 = vector.load %arg3[%c0_2, %c0_3] : memref<16x128xf32, #tpu.memory_space<vmem>>, vector<16x128xf32>
    %5 = math.absf %3 : vector<16x128xf32>
    %cst = arith.constant 0.000000e+00 : f32
    %6 = vector.broadcast %cst : f32 to vector<16x128xf32>
    %7 = arith.subf %6, %5 : vector<16x128xf32>
    %8 = math.exp %7 : vector<16x128xf32>
    %cst_4 = arith.constant 0.000000e+00 : f32
    %9 = vector.broadcast %cst_4 : f32 to vector<16x128xf32>
    %10 = arith.maximumf %3, %9 : vector<16x128xf32>
    %11 = arith.mulf %3, %4 : vector<16x128xf32>
    %12 = arith.subf %10, %11 : vector<16x128xf32>
    %13 = math.log1p %8 : vector<16x128xf32>
    %14 = arith.addf %12, %13 : vector<16x128xf32>
    %cst_5 = arith.constant 0.000000e+00 : f32
    %15 = vector.broadcast %cst_5 : f32 to vector<16x128xf32>
    %16 = arith.cmpf oge, %3, %15 : vector<16x128xf32>
    %cst_6 = arith.constant 1.000000e+00 : f32
    %17 = vector.broadcast %cst_6 : f32 to vector<16x128xf32>
    %18 = arith.select %16, %17, %8 : vector<16x128xi1>, vector<16x128xf32>
    %cst_7 = arith.constant 1.000000e+00 : f32
    %19 = vector.broadcast %cst_7 : f32 to vector<16x128xf32>
    %20 = arith.addf %19, %8 : vector<16x128xf32>
    %21 = arith.divf %18, %20 : vector<16x128xf32>
    %c0_8 = arith.constant 0 : index
    %c0_9 = arith.constant 0 : index
    %22 = vector.load %arg5[%c0_8, %c0_9] : memref<8x128xf32, #tpu.memory_space<vmem>>, vector<8x128xf32>
    %23 = vector.shape_cast %14 : vector<16x128xf32> to vector<2x8x128xf32>
    %cst_10 = arith.constant dense<0.000000e+00> : vector<8x128xf32>
    %24 = vector.multi_reduction <add>, %23, %cst_10 [0] : vector<2x8x128xf32> to vector<8x128xf32>
    %25 = arith.addf %22, %24 : vector<8x128xf32>
    %c0_11 = arith.constant 0 : index
    %c0_12 = arith.constant 0 : index
    %26 = vector.load %arg5[%c0_11, %c0_12] : memref<8x128xf32, #tpu.memory_space<vmem>>, vector<8x128xf32>
    tpu.vector_store %arg5[%c0_11, %c0_12], %25 {strides = array<i32>} : memref<8x128xf32, #tpu.memory_space<vmem>>, vector<8x128xf32>,
    %c0_13 = arith.constant 0 : index
    %c0_14 = arith.constant 0 : index
    %27 = vector.load %arg6[%c0_13, %c0_14] : memref<8x128xf32, #tpu.memory_space<vmem>>, vector<8x128xf32>
    %28 = arith.mulf %21, %4 : vector<16x128xf32>
    %29 = vector.shape_cast %28 : vector<16x128xf32> to vector<2x8x128xf32>
    %cst_15 = arith.constant dense<0.000000e+00> : vector<8x128xf32>
    %30 = vector.multi_reduction <add>, %29, %cst_15 [0] : vector<2x8x128xf32> to vector<8x128xf32>
    %31 = arith.addf %27, %30 : vector<8x128xf32>
    %c0_16 = arith.constant 0 : index
    %c0_17 = arith.constant 0 : index
    %32 = vector.load %arg6[%c0_16, %c0_17] : memref<8x128xf32, #tpu.memory_space<vmem>>, vector<8x128xf32>
    tpu.vector_store %arg6[%c0_16, %c0_17], %31 {strides = array<i32>} : memref<8x128xf32, #tpu.memory_space<vmem>>, vector<8x128xf32>,
    %c0_18 = arith.constant 0 : index
    %c0_19 = arith.constant 0 : index
    %33 = vector.load %arg7[%c0_18, %c0_19] : memref<8x128xf32, #tpu.memory_space<vmem>>, vector<8x128xf32>
    %34 = arith.addf %21, %4 : vector<16x128xf32>
    %35 = vector.shape_cast %34 : vector<16x128xf32> to vector<2x8x128xf32>
    %cst_20 = arith.constant dense<0.000000e+00> : vector<8x128xf32>
    %36 = vector.multi_reduction <add>, %35, %cst_20 [0] : vector<2x8x128xf32> to vector<8x128xf32>
    %37 = arith.addf %33, %36 : vector<8x128xf32>
    %c0_21 = arith.constant 0 : index
    %c0_22 = arith.constant 0 : index
    %38 = vector.load %arg7[%c0_21, %c0_22] : memref<8x128xf32, #tpu.memory_space<vmem>>, vector<8x128xf32>
    tpu.vector_store %arg7[%c0_21, %c0_22], %37 {strides = array<i32>} : memref<8x128xf32, #tpu.memory_space<vmem>>, vector<8x128xf32>,
    %c0_i32_23 = arith.constant 0 : i32
    %39 = arith.cmpi eq, %arg1, %c0_i32_23 : i32
    %40 = arith.extui %39 : i1 to i32
    %c0_i32_24 = arith.constant 0 : i32
    %41 = arith.cmpi ne, %40, %c0_i32_24 : i32
    scf.if %41 {
      %c0_25 = arith.constant 0 : index
      %c0_26 = arith.constant 0 : index
      %42 = vector.load %arg5[%c0_25, %c0_26] : memref<8x128xf32, #tpu.memory_space<vmem>>, vector<8x128xf32>
      %cst_27 = arith.constant dense<0.000000e+00> : vector<128xf32>
      %43 = vector.multi_reduction <add>, %42, %cst_27 [0] : vector<8x128xf32> to vector<128xf32>
      %44 = vector.shape_cast %43 : vector<128xf32> to vector<1x128xf32>
      %c0_28 = arith.constant 0 : index
      %c0_29 = arith.constant 0 : index
      %45 = vector.load %arg6[%c0_28, %c0_29] : memref<8x128xf32, #tpu.memory_space<vmem>>, vector<8x128xf32>
      %cst_30 = arith.constant dense<0.000000e+00> : vector<128xf32>
      %46 = vector.multi_reduction <add>, %45, %cst_30 [0] : vector<8x128xf32> to vector<128xf32>
      %47 = vector.shape_cast %46 : vector<128xf32> to vector<1x128xf32>
      %c0_31 = arith.constant 0 : index
      %c0_32 = arith.constant 0 : index
      %48 = vector.load %arg7[%c0_31, %c0_32] : memref<8x128xf32, #tpu.memory_space<vmem>>, vector<8x128xf32>
      %cst_33 = arith.constant dense<0.000000e+00> : vector<128xf32>
      %49 = vector.multi_reduction <add>, %48, %cst_33 [0] : vector<8x128xf32> to vector<128xf32>
      %50 = vector.shape_cast %49 : vector<128xf32> to vector<1x128xf32>
      %51 = tpu.concatenate %44, %47, %50 in 0 : vector<1x128xf32>, vector<1x128xf32>, vector<1x128xf32> -> vector<3x128xf32>
      %52 = vector.shape_cast %51 : vector<3x128xf32> to vector<1x3x128xf32>
      %c0_34 = arith.constant 0 : index
      %c0_35 = arith.constant 0 : index
      %c0_36 = arith.constant 0 : index
      %53 = vector.load %arg4[%c0_34, %c0_35, %c0_36] : memref<1x3x128xf32, #tpu.memory_space<vmem>>, vector<1x3x128xf32>
      tpu.vector_store %arg4[%c0_34, %c0_35, %c0_36], %52 {strides = array<i32>} : memref<1x3x128xf32, #tpu.memory_space<vmem>>, vector<1x3x128xf32>,
    } else {
    }
    return
  }
  func.func @transform_0(%arg0: i32, %arg1: i32) -> (i32, i32) {
    %c1_i32 = arith.constant 1 : i32
    %0 = arith.muli %arg0, %c1_i32 : i32
    %1 = arith.addi %0, %arg1 : i32
    %c0_i32 = arith.constant 0 : i32
    %c0_i32_0 = arith.constant 0 : i32
    return %1, %c0_i32 : i32, i32
  }
  func.func @transform_1(%arg0: i32, %arg1: i32) -> (i32, i32) {
    %c1_i32 = arith.constant 1 : i32
    %0 = arith.muli %arg0, %c1_i32 : i32
    %1 = arith.addi %0, %arg1 : i32
    %c0_i32 = arith.constant 0 : i32
    %c0_i32_0 = arith.constant 0 : i32
    return %1, %c0_i32 : i32, i32
  }
  func.func @transform_2(%arg0: i32, %arg1: i32) -> (i32, i32, i32) {
    %c0_i32 = arith.constant 0 : i32
    %c0_i32_0 = arith.constant 0 : i32
    %c0_i32_1 = arith.constant 0 : i32
    return %arg0, %c0_i32, %c0_i32_0 : i32, i32, i32
  }
}

</mosaic_0001>

<llo_original>
// kernel: dice_bce_loss.1
$region0: #{dice_bce_loss.1}
  #allocation0 [shape = 'u32[]', space=smem, size = 0x4, offset = 0x4, fixed_abs, tag = 'smem constant byte address 0x4 - core index']
  #allocation1 [shape = 'u32[144,128]{1,0:T(1,128)}', space=vmem, size = 0x12000, scoped, tag = 'internal scratch']
  #allocation2 [shape = 'f32[8,128]{1,0:T(8,128)}', space=vmem, size = 0x1000, scoped, tag = 'scratch operand']
  #allocation3 [shape = 'f32[8,128]{1,0:T(8,128)}', space=vmem, size = 0x1000, scoped, tag = 'scratch operand']
  #allocation4 [shape = 'f32[8,128]{1,0:T(8,128)}', space=vmem, size = 0x1000, scoped, tag = 'scratch operand']
  %s0 = inlined_call_operand.vmem [shape: f32[16,128], index: 0, kind: input, shape index: {}]
  %s1 = inlined_call_operand.vmem [shape: f32[16,128], index: 1, kind: input, shape index: {}]
  %s2 = inlined_call_operand.vmem [shape: f32[1,3,128], index: 2, kind: output, shape index: {}]
  %s3 = sld [smem:[#allocation0]]
  $region26: #{dice_bce_loss.1} parent=0
    _
  %s5 = ssub.s32 1, %s3
  %s6 = scalar_select 0, %s5, %s3
  // Predicated region
  $region2: #{dice_bce_loss.1} parent=0 // pred_check
    _
  $region3: #{dice_bce_loss.1} parent=0 // pred_check_branch
    %8 = sbr.rel (0) target = $region5
  $region4: #{dice_bce_loss.1} parent=0 // pred_region
    %s9 = sadd.s32 0, 0
    %s10 = smul.u32 2, %s9
    %p11 = scmp.lt.s32.totalorder %s10, 1
    %s12 = scalar_select %p11, %s10, 1
    %s13 = smul.addr %s12, 8
    %s14 = scalar_lea.vmem %s0, %s13
    %s15 = sadd.s32 0, 0
    %s16 = smul.u32 2, %s15
  $region5: #{dice_bce_loss.1} parent=0 // pred_fallthru
    _
  // Predicated region
  $region6: #{dice_bce_loss.1} parent=0 // pred_check
    _
  $region7: #{dice_bce_loss.1} parent=0 // pred_check_branch
    %18 = sbr.rel (0) target = $region9
  $region8: #{dice_bce_loss.1} parent=0 // pred_region
    %s19 = sadd.s32 0, 0
    %s20 = smul.u32 2, %s19
    %p21 = scmp.lt.s32.totalorder %s20, 1
    %s22 = scalar_select %p21, %s20, 1
    %s23 = smul.addr %s22, 8
    %s24 = scalar_lea.vmem %s1, %s23
    %s25 = sadd.s32 0, 0
    %s26 = smul.u32 2, %s25
  $region9: #{dice_bce_loss.1} parent=0 // pred_fallthru
    _
  %s27 = sadd.s32 0, 0
  %s28 = smul.u32 2, %s27
  %p29 = scmp.lt.s32.totalorder %s28, 1
  %s30 = scalar_select %p29, %s28, 1
  %s31 = smul.addr %s30, 8
  %s32 = scalar_lea.vmem %s0, %s31
  %s33 = sadd.s32 0, 0
  %s34 = smul.u32 2, %s33
  %p35 = scmp.lt.s32.totalorder %s34, 1
  %s36 = scalar_select %p35, %s34, 1
  %s37 = smul.addr %s36, 8
  %s38 = scalar_lea.vmem %s1, %s37
  %s39 = sadd.s32 0, 0
  %s40 = smul.u32 2, %s39
  %p41 = scmp.lt.s32.totalorder %s40, 1
  %s42 = scalar_select %p41, %s40, 1
  %s43 = smul.addr %s42, 8
  %s44 = scalar_lea.vmem %s0, %s43
  %s45 = sadd.s32 0, 0
  %s46 = smul.u32 2, %s45
  %s47 = sadd.s32 0, 0
  %s48 = smul.u32 2, %s47
  %p49 = scmp.lt.s32.totalorder %s48, 1
  %s50 = scalar_select %p49, %s48, 1
  %s51 = smul.addr %s50, 8
  %s52 = scalar_lea.vmem %s1, %s51
  %s53 = sadd.s32 0, 0
  %s54 = smul.u32 2, %s53
  %p55 = scmp.eq.s32.totalorder 0, 0
  // Predicated region
  $region10: #{dice_bce_loss.1} parent=0 // pred_check
    %p56 = pneg %p55
  $region11: #{dice_bce_loss.1} parent=0 // pred_check_branch
    %58 = sbr.rel (%p56) target = $region13
  $region12: #{dice_bce_loss.1} parent=0 // pred_region
    %59 = vst [vmem:[#allocation2] sm:$0xff] 0.0
    %60 = vst [vmem:[#allocation3] sm:$0xff] 0.0
    %61 = vst [vmem:[#allocation4] sm:$0xff] 0.0
  $region13: #{dice_bce_loss.1} parent=0 // pred_fallthru
    _
  %v62 = vld [vmem:[%s44] sm:$0xff]
  %v63 = vld [vmem:[%s44 + $0x8] sm:$0xff]
  %v64 = vld [vmem:[%s52] sm:$0xff]
  %v65 = vld [vmem:[%s52 + $0x8] sm:$0xff]
  %v66 = vand.u32 2147483647, %v62
  %v67 = vand.u32 2147483647, %v63
  %v68 = vsub.f32 0.0, %v66
  %v69 = vsub.f32 0.0, %v67
  %v70 = vmul.f32 %v68, 1.442695
  %v71 = vpow.pop %v70
  %v72 = vmul.f32 %v69, 1.442695
  %v73 = vpow.pop %v72
  %v74 = vmax.f32 %v62, 0.0
  %v75 = vmax.f32 %v63, 0.0
  %v76 = vmul.f32 %v62, %v64
  %v77 = vmul.f32 %v63, %v65
  %v78 = vsub.f32 %v74, %v76
  %v79 = vsub.f32 %v75, %v77
  %v80 = vadd.f32 %v71, 1.0
  %v81 = vlog2.pop %v80
  %v82 = vmul.f32 %v81, 0.6931472
  %v83 = vmul.f32 -0.5, %v71
  %v84 = vadd.f32 %v83, 1.0
  %v85 = vmul.f32 %v84, %v71
  %v86 = vand.u32 2147483647, %v71
  %vm87 = vcmp.lt.f32.partialorder %v86, 0.0004427343
  %v88 = vsel %vm87, %v85, %v82
  %v89 = vadd.f32 %v73, 1.0
  %v90 = vlog2.pop %v89
  %v91 = vmul.f32 %v90, 0.6931472
  %v92 = vmul.f32 -0.5, %v73
  %v93 = vadd.f32 %v92, 1.0
  %v94 = vmul.f32 %v93, %v73
  %v95 = vand.u32 2147483647, %v73
  %vm96 = vcmp.lt.f32.partialorder %v95, 0.0004427343
  %v97 = vsel %vm96, %v94, %v91
  %v98 = vadd.f32 %v78, %v88
  %v99 = vadd.f32 %v79, %v97
  %vm100 = vcmp.ge.f32.partialorder %v62, 0.0
  %vm101 = vcmp.ge.f32.partialorder %v63, 0.0
  %v102 = vsel %vm100, 1.0, %v71
  %v103 = vsel %vm101, 1.0, %v73
  %v104 = vadd.f32 %v71, 1.0
  %v105 = vadd.f32 %v73, 1.0
  %v106 = vrcp.pop %v104
  %v107 = vmul.f32 %v102, %v106
  %v108 = vrcp.pop %v105
  %v109 = vmul.f32 %v103, %v108
  %v110 = vld [vmem:[#allocation2] sm:$0xff]
  %v111 = vadd.f32 %v98, %v99
  %v112 = vadd.f32 %v110, %v111
  %113 = vst [vmem:[#allocation2] sm:$0xff] %v112
  %v114 = vld [vmem:[#allocation3] sm:$0xff]
  %v115 = vmul.f32 %v107, %v64
  %v116 = vmul.f32 %v109, %v65
  %v117 = vadd.f32 %v115, %v116
  %v118 = vadd.f32 %v114, %v117
  %119 = vst [vmem:[#allocation3] sm:$0xff] %v118
  %v120 = vld [vmem:[#allocation4] sm:$0xff]
  %v121 = vadd.f32 %v107, %v64
  %v122 = vadd.f32 %v109, %v65
  %v123 = vadd.f32 %v121, %v122
  %v124 = vadd.f32 %v120, %v123
  %125 = vst [vmem:[#allocation4] sm:$0xff] %v124
  // Predicated region
  $region14: #{dice_bce_loss.1} parent=0 // pred_check
    %p126 = pneg %p55
  $region15: #{dice_bce_loss.1} parent=0 // pred_check_branch
    %128 = sbr.rel (%p126) target = $region17
  $region16: #{dice_bce_loss.1} parent=0 // pred_region
    %v129 = vld [vmem:[#allocation2] sm:$0xff]
    %v130 = vrot.slane %v129, 4
    %v131 = vadd.f32 %v129, %v130
    %v132 = vrot.slane %v131, 2
    %v133 = vadd.f32 %v131, %v132
    %v134 = vrot.slane %v133, 1
    %v135 = vadd.f32 %v133, %v134
    %v136 = vld [vmem:[#allocation3] sm:$0xff]
    %v137 = vrot.slane %v136, 4
    %v138 = vadd.f32 %v136, %v137
    %v139 = vrot.slane %v138, 2
    %v140 = vadd.f32 %v138, %v139
    %v141 = vrot.slane %v140, 1
    %v142 = vadd.f32 %v140, %v141
    %v143 = vld [vmem:[#allocation4] sm:$0xff]
    %v144 = vrot.slane %v143, 4
    %v145 = vadd.f32 %v143, %v144
    %v146 = vrot.slane %v145, 2
    %v147 = vadd.f32 %v145, %v146
    %v148 = vrot.slane %v147, 1
    %v149 = vadd.f32 %v147, %v148
    %vm150 = vcmask 1040384
    %v151 = vsel %vm150, %v135, %v142
    %vm152 = vcmask 1041408
    %v153 = vsel %vm152, %v151, %v149
    %154 = vst [vmem:[%s2] sm:$0x7] %v153
  $region17: #{dice_bce_loss.1} parent=0 // pred_fallthru
    _
  // Predicated region
  $region18: #{dice_bce_loss.1} parent=0 // pred_check
    _
  $region19: #{dice_bce_loss.1} parent=0 // pred_check_branch
    %156 = sbr.rel (0) target = $region21
  $region20: #{dice_bce_loss.1} parent=0 // pred_region
    _
  $region21: #{dice_bce_loss.1} parent=0 // pred_fallthru
    _
  // Predicated region
  $region22: #{dice_bce_loss.1} parent=0 // pred_check
    _
  $region23: #{dice_bce_loss.1} parent=0 // pred_check_branch
    %158 = sbr.rel (0) target = $region25
  $region24: #{dice_bce_loss.1} parent=0 // pred_region
    _
  $region25: #{dice_bce_loss.1} parent=0 // pred_fallthru
    _

</llo_original>
